<compile_context>
chip_gen: v5e
topology: v5e:2x2
jax: 0.10.0
libtpu: 0.0.40
codegen_flags: <defaults>
</compile_context>

<pallas_src>
import math

import jax
import jax.numpy as jnp
from jax import lax
from jax.experimental import pallas as pl
from jax.experimental.pallas import tpu as pltpu


def protonet_kernel(x_ref, pmat_ref, smask_ref, wh_ref, bh_ref, wo_ref, bo_ref,
                    out_ref):
    """One grid step = EB episodes, fully fused via block-diagonal matrices.

    x_ref    : (1, EB*(NC*NS + Ntot), Din)  raw support rows of all EB episodes,
                                            followed by raw query rows.
    pmat_ref : (EB*NC*NS, EB*NC*NS)  replicated prototype-averaging matrix:
               pmat[e*NC*NS + i*NS + j, e*NC*NS + j*NS + s] = 1/NS.
    smask_ref: (EB*Ntot, EB*NC*NS)   query->support block-diagonal 0/1 mask:
               smask[e*Ntot + i, e*NC*NS + i*NS + s] = 1   (requires NS == NC).
    """
    x = x_ref[0]
    pmat = pmat_ref[...]
    smask = smask_ref[...]
    wh = wh_ref[...]                   # (Din, H)
    bh = bh_ref[...]                   # (1, H)
    wo = wo_ref[...]                   # (H, O)
    bo = bo_ref[...]                   # (1, O)

    n_sup = pmat.shape[0]              # EB*NC*NS  (always a multiple of 8)
    n_q = smask.shape[0]               # EB*Ntot

    sup_raw = x[:n_sup]                # prototypes use RAW support features

    # Hidden layer for every support + query row of the step: ONE MXU matmul.
    h = jnp.maximum(jnp.dot(x, wh, preferred_element_type=jnp.float32) + bh, 0.0)
    h_sup = h[:n_sup]                  # (EB*NC*NS, H)  slice at sublane-tile boundary
    h_q = h[n_sup:]                    # (EB*Ntot,  H)

    # Replicated prototypes: row e*NC*NS + i*NS + j holds the class-j prototype
    # of episode e (one prototype row per (query slot, class) support column).
    proto = jnp.dot(pmat, sup_raw, preferred_element_type=jnp.float32)       # (EB*NC*NS, Din)

    # -||p - q||^2 = 2 q.p - ||p||^2 - ||q||^2 ; ||q||^2 is constant per query
    # row and cancels in the softmax.  ||p||^2 is folded into the gram matmul
    # via an augmented column (-0.5*||p||^2 paired with a constant-1 column).
    psq = jnp.sum(proto * proto, axis=-1, keepdims=True)                     # (EB*NC*NS, 1)
    proto_aug = jnp.concatenate([proto, -0.5 * psq], axis=1)                 # (EB*NC*NS, Din+1)
    hq_aug = jnp.concatenate(
        [h_q, jnp.ones((n_q, 1), jnp.float32)], axis=1)                      # (EB*Ntot, Din+1)
    logits = 2.0 * lax.dot_general(hq_aug, proto_aug, (((1,), (1,)), ((), ())),
                                   preferred_element_type=jnp.float32)       # (EB*Ntot, EB*NC*NS)

    # Mask cross-episode / cross-query-slot columns, then a single softmax.
    # Each valid column holds a distinct class's logit, so this directly
    # yields the expanded probs matrix used by the final contraction.
    logits = jnp.where(smask > 0.5, logits, -1e30)
    m = jnp.max(logits, axis=-1, keepdims=True)
    ex = jnp.exp(logits - m)
    probs = ex / jnp.sum(ex, axis=-1, keepdims=True)                         # (EB*Ntot, EB*NC*NS)

    # Output layer on hidden support rows + weighted sum, one matmul each:
    # out[e*Ntot + i, :] = sum_s probs[class s] * scores[class i, support s].
    scores = jnp.dot(h_sup, wo, preferred_element_type=jnp.float32) + bo     # (EB*NC*NS, O)
    out = jnp.dot(probs, scores, preferred_element_type=jnp.float32)         # (EB*Ntot, O)

    out_ref[0] = out.astype(out_ref.dtype)


def _default_grid_steps(num_episodes: int) -> int:
    """1 grid step on single-TC chips (v5e / v6e): no megacore to feed, so
    minimize step count.  2 'parallel' steps elsewhere (v7x / megacore) so the
    grid axis can shard across TensorCores."""
    if num_episodes < 2:
        return 1
    try:
        kind = jax.devices()[0].device_kind.lower()
    except Exception:
        return 1
    single_tc = ("lite" in kind) or ("v5e" in kind) or ("v6e" in kind)
    return 1 if single_tc else 2


def protonet_forward_batched(support, query, w_hidden, b_hidden, w_output,
                             b_output, grid_steps=None):
    """Batched ProtoNet forward.

    support : (E, NC, NS, Din)      query : (E, NC*NQ, Din)
    w_hidden: (H, Din)  b_hidden: (H,)  w_output: (O, H)  b_output: (O,)
    Returns (E, NC*NQ, O).
    """
    e, nc, ns, din = support.shape
    ntot = query.shape[1]
    hdim = w_hidden.shape[0]
    odim = w_output.shape[0]

    # Constraints implied by the PyTorch module's broadcasting.
    assert din == hdim, "ProtoNet requires input_dim == hidden_dim"
    assert ns == nc and ntot == nc, \
        "ProtoNet requires num_support == num_classes, num_queries == 1"

    ncns = nc * ns

    if grid_steps is None:
        grid_steps = _default_grid_steps(e)
    grid_steps = int(max(1, min(grid_steps, e)))
    eb = -(-e // grid_steps)               # episodes per grid step (ceil)
    e_pad = eb * grid_steps

    support = support.astype(jnp.float32)
    query = query.astype(jnp.float32)
    if e_pad > e:                          # pad with dummy episodes, sliced off below
        support = jnp.concatenate(
            [support, jnp.zeros((e_pad - e, nc, ns, din), jnp.float32)], axis=0)
        query = jnp.concatenate(
            [query, jnp.zeros((e_pad - e, ntot, din), jnp.float32)], axis=0)

    # Per-step row layout: [EB episodes' support rows ; EB episodes' query rows].
    # EB*NC*NS is a multiple of 8, so the in-kernel row slices stay on
    # sublane-tile boundaries without any pad rows.
    sup_steps = support.reshape(grid_steps, eb * ncns, din)
    q_steps = query.reshape(grid_steps, eb * ntot, din)
    x = jnp.concatenate([sup_steps, q_steps], axis=1)    # (steps, EB*(NCNS+Ntot), Din)
    rows_step = eb * (ncns + ntot)

    # Host-built episode-block-diagonal constants (VMEM-resident across the grid).
    eye_eb = jnp.eye(eb, dtype=jnp.float32)
    # Query->support selection mask; also the softmax validity mask.
    smask_1 = jnp.kron(jnp.eye(nc, dtype=jnp.float32), jnp.ones((1, ns), jnp.float32))
    smask = jnp.kron(eye_eb, smask_1)                    # (EB*Ntot, EB*NCNS)
    # Replicated prototype-averaging matrix; the j*NS+s column indexing relies
    # on NS == NC (asserted above).
    pmat_1 = jnp.kron(jnp.ones((nc, 1), jnp.float32),
                      jnp.kron(jnp.eye(ns, dtype=jnp.float32),
                               jnp.ones((1, ns), jnp.float32))) / float(ns)
    pmat = jnp.kron(eye_eb, pmat_1)                      # (EB*NCNS, EB*NCNS)

    wh_t = w_hidden.T.astype(jnp.float32)                # (Din, H)
    bh2 = b_hidden.reshape(1, hdim).astype(jnp.float32)  # (1, H)
    wo_t = w_output.T.astype(jnp.float32)                # (H, O)
    bo2 = b_output.reshape(1, odim).astype(jnp.float32)  # (1, O)

    def const2d(shape):
        return pl.BlockSpec(shape, lambda s: (0, 0))     # resident across all steps

    out = pl.pallas_call(
        protonet_kernel,
        out_shape=jax.ShapeDtypeStruct((grid_steps, eb * ntot, odim), jnp.float32),
        grid_spec=pltpu.PrefetchScalarGridSpec(
            num_scalar_prefetch=0,
            grid=(grid_steps,),
            in_specs=[
                pl.BlockSpec((1, rows_step, din), lambda s: (s, 0, 0)),  # per-step rows
                const2d((eb * ncns, eb * ncns)),                          # pmat
                const2d((eb * ntot, eb * ncns)),                          # smask
                const2d((din, hdim)),                                     # Wh^T
                const2d((1, hdim)),                                       # bh
                const2d((hdim, odim)),                                    # Wo^T
                const2d((1, odim)),                                       # bo
            ],
            out_specs=pl.BlockSpec((1, eb * ntot, odim), lambda s: (s, 0, 0)),
        ),
        compiler_params=pltpu.CompilerParams(
            dimension_semantics=("parallel",)),  # shards steps across TCs (v7x / megacore)
    )(x, pmat, smask, wh_t, bh2, wo_t, bo2)

    return out.reshape(e_pad, ntot, odim)[:e]


def protonet_forward(support, query, w_hidden, b_hidden, w_output, b_output):
    """Single-episode API matching the PyTorch module signature."""
    out = protonet_forward_batched(support[None], query[None],
                                   w_hidden, b_hidden, w_output, b_output,
                                   grid_steps=1)
    return out[0]


def protonet_reference(support, query, w_hidden, b_hidden, w_output, b_output):
    """Pure-JAX transliteration of the PyTorch forward (for verification)."""
    nc, ns, din = support.shape
    ntot = query.shape[0]
    hp = jax.lax.Precision.HIGHEST
    proto = support.mean(axis=1)                                          # (NC, Din)
    hs = jax.nn.relu(jnp.einsum('csd,hd->csh', support, w_hidden, precision=hp) + b_hidden)
    hq = jax.nn.relu(jnp.dot(query, w_hidden.T, precision=hp) + b_hidden)
    dist = -jnp.sum((proto[None, :, :] - hq[:, None, :]) ** 2, axis=-1)   # (Ntot, NC)
    probs = jax.nn.softmax(dist, axis=-1)
    scores = jnp.dot(hs.reshape(nc * ns, -1), w_output.T, precision=hp) + b_output
    scores = scores.reshape(nc, ns, -1)
    out = jnp.sum(probs[:, :, None] * scores, axis=1)
    return out.reshape(ntot, -1)


if __name__ == "__main__":
    E = 8                          # episodes
    NC, NS, NQ = 4, 4, 1           # num_classes, num_support, num_queries
    DIN = 32                       # input_dim (== hidden_dim, required by module)
    H = 32                         # hidden_dim
    O = 16                         # output_dim

    key = jax.random.PRNGKey(0)
    k1, k2, k3, k4, k5, k6 = jax.random.split(key, 6)
    support = jax.random.normal(k1, (E, NC, NS, DIN), dtype=jnp.float32)
    query = jax.random.normal(k2, (E, NC * NQ, DIN), dtype=jnp.float32)

    # Deterministic PyTorch-style Linear init: U(-1/sqrt(fan_in), 1/sqrt(fan_in)).
    bnd_h = 1.0 / math.sqrt(DIN)
    w_hidden = jax.random.uniform(k3, (H, DIN), jnp.float32, -bnd_h, bnd_h)
    b_hidden = jax.random.uniform(k4, (H,), jnp.float32, -bnd_h, bnd_h)
    bnd_o = 1.0 / math.sqrt(H)
    w_output = jax.random.uniform(k5, (O, H), jnp.float32, -bnd_o, bnd_o)
    b_output = jax.random.uniform(k6, (O,), jnp.float32, -bnd_o, bnd_o)

    ref = jax.vmap(protonet_reference, in_axes=(0, 0, None, None, None, None))(
        support, query, w_hidden, b_hidden, w_output, b_output)

    # Auto grid choice (1 step on v5e/v6e, 2 parallel steps on v7x/megacore).
    out = protonet_forward_batched(support, query, w_hidden, b_hidden,
                                   w_output, b_output)
    out = jax.block_until_ready(out)
    assert out.shape == (E, NC * NQ, O), out.shape
    err = float(jnp.max(jnp.abs(out - ref)))
    assert err < 2e-3, f"auto-grid mismatch: max abs err = {err}"

    # Explicitly exercise both recommended configurations on whatever chip runs this.
    for steps in (1, 2):
        o = jax.block_until_ready(protonet_forward_batched(
            support, query, w_hidden, b_hidden, w_output, b_output,
            grid_steps=steps))
        es = float(jnp.max(jnp.abs(o - ref)))
        assert es < 2e-3, f"grid_steps={steps} mismatch: max abs err = {es}"

    # Single-episode API matching the PyTorch module call signature.
    out0 = jax.block_until_ready(protonet_forward(
        support[0], query[0], w_hidden, b_hidden, w_output, b_output))
    assert out0.shape == (NC * NQ, O), out0.shape
    err0 = float(jnp.max(jnp.abs(out0 - ref[0])))
    assert err0 < 2e-3, f"single-episode mismatch: max abs err = {err0}"

    print("KERNEL_OK")
</pallas_src>

<mosaic_0001>
module attributes {stable_mosaic.version = 11 : i64} {
  func.func @protonet_kernel(%arg0: i32, %arg1: memref<1x80x32xf32, #tpu.memory_space<vmem>>, %arg2: memref<64x64xf32, #tpu.memory_space<vmem>>, %arg3: memref<16x64xf32, #tpu.memory_space<vmem>>, %arg4: memref<32x32xf32, #tpu.memory_space<vmem>>, %arg5: memref<1x32xf32, #tpu.memory_space<vmem>>, %arg6: memref<32x16xf32, #tpu.memory_space<vmem>>, %arg7: memref<1x16xf32, #tpu.memory_space<vmem>>, %arg8: memref<1x16x16xf32, #tpu.memory_space<vmem>>) attributes {dimension_semantics = [#tpu.dimension_semantics<parallel>], iteration_bounds = array<i64: 2>, scalar_prefetch = 0 : i64, scratch_operands = 0 : i64, tpu.core_type = #tpu.core_type<tc>, window_params = [{transform_indices = @transform_0, window_bounds = array<i64: 1, 80, 32>}, {pipeline_mode = #tpu.pipeline_mode<synchronous>, transform_indices = @transform_1, window_bounds = array<i64: 64, 64>}, {pipeline_mode = #tpu.pipeline_mode<synchronous>, transform_indices = @transform_2, window_bounds = array<i64: 16, 64>}, {pipeline_mode = #tpu.pipeline_mode<synchronous>, transform_indices = @transform_3, window_bounds = array<i64: 32, 32>}, {pipeline_mode = #tpu.pipeline_mode<synchronous>, transform_indices = @transform_4, window_bounds = array<i64: 1, 32>}, {pipeline_mode = #tpu.pipeline_mode<synchronous>, transform_indices = @transform_5, window_bounds = array<i64: 32, 16>}, {pipeline_mode = #tpu.pipeline_mode<synchronous>, transform_indices = @transform_6, window_bounds = array<i64: 1, 16>}, {transform_indices = @transform_7, window_bounds = array<i64: 1, 16, 16>}]} {
    %c0 = arith.constant 0 : index
    %c0_0 = arith.constant 0 : index
    %c0_1 = arith.constant 0 : index
    %0 = vector.load %arg1[%c0, %c0_0, %c0_1] : memref<1x80x32xf32, #tpu.memory_space<vmem>>, vector<1x80x32xf32>
    %1 = vector.shape_cast %0 : vector<1x80x32xf32> to vector<80x32xf32>
    %c0_2 = arith.constant 0 : index
    %c0_3 = arith.constant 0 : index
    %2 = vector.load %arg2[%c0_2, %c0_3] : memref<64x64xf32, #tpu.memory_space<vmem>>, vector<64x64xf32>
    %c0_4 = arith.constant 0 : index
    %c0_5 = arith.constant 0 : index
    %3 = vector.load %arg3[%c0_4, %c0_5] : memref<16x64xf32, #tpu.memory_space<vmem>>, vector<16x64xf32>
    %c0_6 = arith.constant 0 : index
    %c0_7 = arith.constant 0 : index
    %4 = vector.load %arg4[%c0_6, %c0_7] : memref<32x32xf32, #tpu.memory_space<vmem>>, vector<32x32xf32>
    %c0_8 = arith.constant 0 : index
    %c0_9 = arith.constant 0 : index
    %5 = vector.load %arg5[%c0_8, %c0_9] : memref<1x32xf32, #tpu.memory_space<vmem>>, vector<1x32xf32>
    %c0_10 = arith.constant 0 : index
    %c0_11 = arith.constant 0 : index
    %6 = vector.load %arg6[%c0_10, %c0_11] : memref<32x16xf32, #tpu.memory_space<vmem>>, vector<32x16xf32>
    %c0_12 = arith.constant 0 : index
    %c0_13 = arith.constant 0 : index
    %7 = vector.load %arg7[%c0_12, %c0_13] : memref<1x16xf32, #tpu.memory_space<vmem>>, vector<1x16xf32>
    %8 = vector.extract_strided_slice %1 {offsets = [0, 0], sizes = [64, 32], strides = [1, 1]} : vector<80x32xf32> to vector<64x32xf32>
    %cst = arith.constant dense<0.000000e+00> : vector<80x32xf32>
    %9 = tpu.matmul %1, %4, %cst {dimension_numbers = #tpu.dot_dimension_numbers<[1], [0], [0], [1], [0, 0, 1, 1], [], []>} : vector<80x32xf32>, vector<32x32xf32>, vector<80x32xf32> -> vector<80x32xf32>
    %10 = vector.broadcast %5 : vector<1x32xf32> to vector<80x32xf32>
    %11 = arith.addf %9, %10 : vector<80x32xf32>
    %cst_14 = arith.constant 0.000000e+00 : f32
    %12 = vector.broadcast %cst_14 : f32 to vector<80x32xf32>
    %13 = arith.maximumf %11, %12 : vector<80x32xf32>
    %14 = vector.extract_strided_slice %13 {offsets = [0, 0], sizes = [64, 32], strides = [1, 1]} : vector<80x32xf32> to vector<64x32xf32>
    %15 = vector.extract_strided_slice %13 {offsets = [64, 0], sizes = [16, 32], strides = [1, 1]} : vector<80x32xf32> to vector<16x32xf32>
    %cst_15 = arith.constant dense<0.000000e+00> : vector<64x32xf32>
    %16 = tpu.matmul %2, %8, %cst_15 {dimension_numbers = #tpu.dot_dimension_numbers<[1], [0], [0], [1], [0, 0, 1, 1], [], []>} : vector<64x64xf32>, vector<64x32xf32>, vector<64x32xf32> -> vector<64x32xf32>
    %17 = arith.mulf %16, %16 : vector<64x32xf32>
    %cst_16 = arith.constant dense<0.000000e+00> : vector<64xf32>
    %18 = vector.multi_reduction <add>, %17, %cst_16 [1] : vector<64x32xf32> to vector<64xf32>
    %19 = vector.shape_cast %18 : vector<64xf32> to vector<64x1xf32>
    %cst_17 = arith.constant -5.000000e-01 : f32
    %20 = vector.broadcast %cst_17 : f32 to vector<64x1xf32>
    %21 = arith.mulf %20, %19 : vector<64x1xf32>
    %22 = tpu.concatenate %16, %21 in 1 : vector<64x32xf32>, vector<64x1xf32> -> vector<64x33xf32>
    %cst_18 = arith.constant 1.000000e+00 : f32
    %23 = vector.broadcast %cst_18 : f32 to vector<16x1xf32>
    %24 = tpu.concatenate %15, %23 in 1 : vector<16x32xf32>, vector<16x1xf32> -> vector<16x33xf32>
    %cst_19 = arith.constant dense<0.000000e+00> : vector<16x64xf32>
    %25 = tpu.matmul %24, %22, %cst_19 {dimension_numbers = #tpu.dot_dimension_numbers<[1], [1], [0], [0], [0, 0, 1, 0], [], []>} : vector<16x33xf32>, vector<64x33xf32>, vector<16x64xf32> -> vector<16x64xf32>
    %cst_20 = arith.constant 2.000000e+00 : f32
    %26 = vector.broadcast %cst_20 : f32 to vector<16x64xf32>
    %27 = arith.mulf %26, %25 : vector<16x64xf32>
    %cst_21 = arith.constant 5.000000e-01 : f32
    %28 = vector.broadcast %cst_21 : f32 to vector<16x64xf32>
    %29 = arith.cmpf ogt, %3, %28 : vector<16x64xf32>
    %cst_22 = arith.constant -1.000000e+30 : f32
    %30 = vector.broadcast %cst_22 : f32 to vector<16x64xf32>
    %31 = arith.select %29, %27, %30 : vector<16x64xi1>, vector<16x64xf32>
    %cst_23 = arith.constant dense<0xFF800000> : vector<16xf32>
    %32 = vector.multi_reduction <maximumf>, %31, %cst_23 [1] : vector<16x64xf32> to vector<16xf32>
    %33 = vector.shape_cast %32 : vector<16xf32> to vector<16x1xf32>
    %34 = vector.broadcast %33 : vector<16x1xf32> to vector<16x64xf32>
    %35 = arith.subf %31, %34 : vector<16x64xf32>
    %36 = math.exp %35 : vector<16x64xf32>
    %cst_24 = arith.constant dense<0.000000e+00> : vector<16xf32>
    %37 = vector.multi_reduction <add>, %36, %cst_24 [1] : vector<16x64xf32> to vector<16xf32>
    %38 = vector.shape_cast %37 : vector<16xf32> to vector<16x1xf32>
    %39 = vector.broadcast %38 : vector<16x1xf32> to vector<16x64xf32>
    %40 = arith.divf %36, %39 : vector<16x64xf32>
    %cst_25 = arith.constant dense<0.000000e+00> : vector<64x16xf32>
    %41 = tpu.matmul %14, %6, %cst_25 {dimension_numbers = #tpu.dot_dimension_numbers<[1], [0], [0], [1], [0, 0, 1, 1], [], []>} : vector<64x32xf32>, vector<32x16xf32>, vector<64x16xf32> -> vector<64x16xf32>
    %42 = vector.broadcast %7 : vector<1x16xf32> to vector<64x16xf32>
    %43 = arith.addf %41, %42 : vector<64x16xf32>
    %cst_26 = arith.constant dense<0.000000e+00> : vector<16x16xf32>
    %44 = tpu.matmul %40, %43, %cst_26 {dimension_numbers = #tpu.dot_dimension_numbers<[1], [0], [0], [1], [0, 0, 1, 1], [], []>} : vector<16x64xf32>, vector<64x16xf32>, vector<16x16xf32> -> vector<16x16xf32>
    %c0_27 = arith.constant 0 : index
    %c0_28 = arith.constant 0 : index
    %c0_29 = arith.constant 0 : index
    %45 = vector.load %arg8[%c0_27, %c0_28, %c0_29] : memref<1x16x16xf32, #tpu.memory_space<vmem>>, vector<1x16x16xf32>
    %46 = vector.shape_cast %45 : vector<1x16x16xf32> to vector<16x16xf32>
    %47 = vector.shape_cast %44 : vector<16x16xf32> to vector<1x16x16xf32>
    tpu.vector_store %arg8[%c0_27, %c0_28, %c0_29], %47 {strides = array<i32>} : memref<1x16x16xf32, #tpu.memory_space<vmem>>, vector<1x16x16xf32>,
    return
  }
  func.func @transform_0(%arg0: i32) -> (i32, i32, i32) {
    %c0_i32 = arith.constant 0 : i32
    %c0_i32_0 = arith.constant 0 : i32
    %c0_i32_1 = arith.constant 0 : i32
    return %arg0, %c0_i32, %c0_i32_0 : i32, i32, i32
  }
  func.func @transform_1(%arg0: i32) -> (i32, i32) {
    %c0_i32 = arith.constant 0 : i32
    %c0_i32_0 = arith.constant 0 : i32
    %c0_i32_1 = arith.constant 0 : i32
    return %c0_i32, %c0_i32_0 : i32, i32
  }
  func.func @transform_2(%arg0: i32) -> (i32, i32) {
    %c0_i32 = arith.constant 0 : i32
    %c0_i32_0 = arith.constant 0 : i32
    %c0_i32_1 = arith.constant 0 : i32
    return %c0_i32, %c0_i32_0 : i32, i32
  }
  func.func @transform_3(%arg0: i32) -> (i32, i32) {
    %c0_i32 = arith.constant 0 : i32
    %c0_i32_0 = arith.constant 0 : i32
    %c0_i32_1 = arith.constant 0 : i32
    return %c0_i32, %c0_i32_0 : i32, i32
  }
  func.func @transform_4(%arg0: i32) -> (i32, i32) {
    %c0_i32 = arith.constant 0 : i32
    %c0_i32_0 = arith.constant 0 : i32
    %c0_i32_1 = arith.constant 0 : i32
    return %c0_i32, %c0_i32_0 : i32, i32
  }
  func.func @transform_5(%arg0: i32) -> (i32, i32) {
    %c0_i32 = arith.constant 0 : i32
    %c0_i32_0 = arith.constant 0 : i32
    %c0_i32_1 = arith.constant 0 : i32
    return %c0_i32, %c0_i32_0 : i32, i32
  }
  func.func @transform_6(%arg0: i32) -> (i32, i32) {
    %c0_i32 = arith.constant 0 : i32
    %c0_i32_0 = arith.constant 0 : i32
    %c0_i32_1 = arith.constant 0 : i32
    return %c0_i32, %c0_i32_0 : i32, i32
  }
  func.func @transform_7(%arg0: i32) -> (i32, i32, i32) {
    %c0_i32 = arith.constant 0 : i32
    %c0_i32_0 = arith.constant 0 : i32
    %c0_i32_1 = arith.constant 0 : i32
    return %arg0, %c0_i32, %c0_i32_0 : i32, i32, i32
  }
}

</mosaic_0001>

<llo_original>
// kernel: tpu_custom_call.1
$region0: #{tpu_custom_call.1}
  #allocation0 [shape = 'u32[]', space=smem, size = 0x4, offset = 0x4, fixed_abs, tag = 'smem constant byte address 0x4 - core index']
  #allocation1 [shape = 'u32[72,128]{1,0:T(1,128)}', space=vmem, size = 0x9000, scoped, tag = 'internal scratch']
  %s0 = inlined_call_operand.vmem [shape: f32[2,80,32], index: 0, kind: input, shape index: {}]
  %s1 = inlined_call_operand.vmem [shape: f32[64,64], index: 1, kind: input, shape index: {}]
  %s2 = inlined_call_operand.vmem [shape: f32[16,64], index: 2, kind: input, shape index: {}]
  %s3 = inlined_call_operand.vmem [shape: f32[32,32], index: 3, kind: input, shape index: {}]
  %s4 = inlined_call_operand.vmem [shape: f32[1,32], index: 4, kind: input, shape index: {}]
  %s5 = inlined_call_operand.vmem [shape: f32[32,16], index: 5, kind: input, shape index: {}]
  %s6 = inlined_call_operand.vmem [shape: f32[1,16], index: 6, kind: input, shape index: {}]
  %s7 = inlined_call_operand.hbm [shape: f32[2,16,16], index: 7, kind: output, shape index: {}]
  %s8 = sld [smem:[#allocation0]]
  $region61: #{tpu_custom_call.1} parent=0
    _
  %s10 = ssub.s32 1, %s8
  %s11 = scalar_select 0, %s10, %s8
  $region1: #{tpu_custom_call.1} parent=0
    #allocation2 [shape = 'u8[16384]{0}', space=vmem, size = 0x4000, scoped, tag = 'output window, operand 0']
    #allocation3 [shape = 's32[2]{0}', space=sflag, size = 0x8, scoped, tag = 'scoped memory for tpu_custom_call.1']
    %12 = vsyncpa [#allocation3], 0
    %s13 = scalar_lea.sflag [#allocation3], 1
    %14 = vsyncpa %s13, 0
    loop: start=0, step=1, limit=4
    $region2: #{tpu_custom_call.1} parent=1 // loop_pre_header
      _
    $region3: #{tpu_custom_call.1} parent=1 // loop_header
      %s16 = sphi 0, %s20
      %p17 = scmp.ge.s32.totalorder %s16, 4
      %s26 = sphi 0, %s28
      %s29 = sphi 0, %s26
      %s30 = sphi 0, %s29
      %s46 = sphi 0, %s30
      %s50 = sphi 0, %s50
      %s52 = sphi 0, %s50
      %s53 = sphi 0, %s52
      %s67 = sphi 0, %s53
      %s71 = sphi 0, %s71
      %s73 = sphi 0, %s71
      %s74 = sphi 0, %s73
      %s88 = sphi 0, %s74
      %s92 = sphi 0, %s92
      %s94 = sphi 0, %s92
      %s95 = sphi 0, %s94
      %s109 = sphi 0, %s95
      %s113 = sphi 0, %s113
      %s115 = sphi 0, %s113
      %s116 = sphi 0, %s115
      %s130 = sphi 0, %s116
      %s134 = sphi 0, %s134
      %s136 = sphi 0, %s134
      %s137 = sphi 0, %s136
      %s151 = sphi 0, %s137
      %s155 = sphi 0, %s155
      %s157 = sphi 0, %s155
      %s158 = sphi 0, %s157
      %s172 = sphi 0, %s158
      %s178 = sphi 0, %s180
      %s181 = sphi 0, %s178
      %s182 = sphi 0, %s181
      %s198 = sphi 0, %s182
    $region4: #{tpu_custom_call.1} parent=1 // loop_header_branch
      %19 = sbr.rel (%p17) target = $region8
    $region5: #{tpu_custom_call.1} parent=1 // loop_body
      %s21 = ssub.s32 %s16, 1
      %s22 = ssub.s32 %s16, 2
      %s23 = sadd.s32 %s16, 1
      %s24 = ssub.s32 %s16, %s23
      %p25 = scmp.eq.s32.totalorder %s24, 0
      %s27 = sadd.s32 %s26, 1
      %s28 = scalar_select %p25, %s26, %s27
      %p31 = pneg %p25
      %p32 = scmp.eq.s32.totalorder %s16, 1
      %p33 = por %p31, %p32
      %p34 = scmp.ne.s32.totalorder %s26, %s29
      %p35 = scmp.eq.s32.totalorder %s16, 0
      %p36 = por %p34, %p35
      %p37 = scmp.ne.s32.totalorder %s26, %s29
      %p38 = scmp.eq.s32.totalorder %s21, 1
      %p39 = por %p37, %p38
      %p40 = scmp.ne.s32.totalorder %s29, %s30
      %p41 = scmp.eq.s32.totalorder %s21, 0
      %p42 = por %p40, %p41
      %p43 = scmp.ne.s32.totalorder %s29, %s30
      %p44 = scmp.eq.s32.totalorder %s22, 1
      %p45 = por %p43, %p44
      %p47 = scmp.ne.s32.totalorder %s30, %s46
      %p48 = scmp.eq.s32.totalorder %s22, 0
      %p49 = por %p47, %p48
      %s51 = sadd.s32 %s50, 1
      %p54 = scmp.eq.s32.totalorder %s16, 1
      %p55 = scmp.ne.s32.totalorder %s50, %s52
      %p56 = scmp.eq.s32.totalorder %s16, 0
      %p57 = por %p55, %p56
      %p58 = scmp.ne.s32.totalorder %s50, %s52
      %p59 = scmp.eq.s32.totalorder %s21, 1
      %p60 = por %p58, %p59
      %p61 = scmp.ne.s32.totalorder %s52, %s53
      %p62 = scmp.eq.s32.totalorder %s21, 0
      %p63 = por %p61, %p62
      %p64 = scmp.ne.s32.totalorder %s52, %s53
      %p65 = scmp.eq.s32.totalorder %s22, 1
      %p66 = por %p64, %p65
      %p68 = scmp.ne.s32.totalorder %s53, %s67
      %p69 = scmp.eq.s32.totalorder %s22, 0
      %p70 = por %p68, %p69
      %s72 = sadd.s32 %s71, 1
      %p75 = scmp.eq.s32.totalorder %s16, 1
      %p76 = scmp.ne.s32.totalorder %s71, %s73
      %p77 = scmp.eq.s32.totalorder %s16, 0
      %p78 = por %p76, %p77
      %p79 = scmp.ne.s32.totalorder %s71, %s73
      %p80 = scmp.eq.s32.totalorder %s21, 1
      %p81 = por %p79, %p80
      %p82 = scmp.ne.s32.totalorder %s73, %s74
      %p83 = scmp.eq.s32.totalorder %s21, 0
      %p84 = por %p82, %p83
      %p85 = scmp.ne.s32.totalorder %s73, %s74
      %p86 = scmp.eq.s32.totalorder %s22, 1
      %p87 = por %p85, %p86
      %p89 = scmp.ne.s32.totalorder %s74, %s88
      %p90 = scmp.eq.s32.totalorder %s22, 0
      %p91 = por %p89, %p90
      %s93 = sadd.s32 %s92, 1
      %p96 = scmp.eq.s32.totalorder %s16, 1
      %p97 = scmp.ne.s32.totalorder %s92, %s94
      %p98 = scmp.eq.s32.totalorder %s16, 0
      %p99 = por %p97, %p98
      %p100 = scmp.ne.s32.totalorder %s92, %s94
      %p101 = scmp.eq.s32.totalorder %s21, 1
      %p102 = por %p100, %p101
      %p103 = scmp.ne.s32.totalorder %s94, %s95
      %p104 = scmp.eq.s32.totalorder %s21, 0
      %p105 = por %p103, %p104
      %p106 = scmp.ne.s32.totalorder %s94, %s95
      %p107 = scmp.eq.s32.totalorder %s22, 1
      %p108 = por %p106, %p107
      %p110 = scmp.ne.s32.totalorder %s95, %s109
      %p111 = scmp.eq.s32.totalorder %s22, 0
      %p112 = por %p110, %p111
      %s114 = sadd.s32 %s113, 1
      %p117 = scmp.eq.s32.totalorder %s16, 1
      %p118 = scmp.ne.s32.totalorder %s113, %s115
      %p119 = scmp.eq.s32.totalorder %s16, 0
      %p120 = por %p118, %p119
      %p121 = scmp.ne.s32.totalorder %s113, %s115
      %p122 = scmp.eq.s32.totalorder %s21, 1
      %p123 = por %p121, %p122
      %p124 = scmp.ne.s32.totalorder %s115, %s116
      %p125 = scmp.eq.s32.totalorder %s21, 0
      %p126 = por %p124, %p125
      %p127 = scmp.ne.s32.totalorder %s115, %s116
      %p128 = scmp.eq.s32.totalorder %s22, 1
      %p129 = por %p127, %p128
      %p131 = scmp.ne.s32.totalorder %s116, %s130
      %p132 = scmp.eq.s32.totalorder %s22, 0
      %p133 = por %p131, %p132
      %s135 = sadd.s32 %s134, 1
      %p138 = scmp.eq.s32.totalorder %s16, 1
      %p139 = scmp.ne.s32.totalorder %s134, %s136
      %p140 = scmp.eq.s32.totalorder %s16, 0
      %p141 = por %p139, %p140
      %p142 = scmp.ne.s32.totalorder %s134, %s136
      %p143 = scmp.eq.s32.totalorder %s21, 1
      %p144 = por %p142, %p143
      %p145 = scmp.ne.s32.totalorder %s136, %s137
      %p146 = scmp.eq.s32.totalorder %s21, 0
      %p147 = por %p145, %p146
      %p148 = scmp.ne.s32.totalorder %s136, %s137
      %p149 = scmp.eq.s32.totalorder %s22, 1
      %p150 = por %p148, %p149
      %p152 = scmp.ne.s32.totalorder %s137, %s151
      %p153 = scmp.eq.s32.totalorder %s22, 0
      %p154 = por %p152, %p153
      %s156 = sadd.s32 %s155, 1
      %p159 = scmp.eq.s32.totalorder %s16, 1
      %p160 = scmp.ne.s32.totalorder %s155, %s157
      %p161 = scmp.eq.s32.totalorder %s16, 0
      %p162 = por %p160, %p161
      %p163 = scmp.ne.s32.totalorder %s155, %s157
      %p164 = scmp.eq.s32.totalorder %s21, 1
      %p165 = por %p163, %p164
      %p166 = scmp.ne.s32.totalorder %s157, %s158
      %p167 = scmp.eq.s32.totalorder %s21, 0
      %p168 = por %p166, %p167
      %p169 = scmp.ne.s32.totalorder %s157, %s158
      %p170 = scmp.eq.s32.totalorder %s22, 1
      %p171 = por %p169, %p170
      %p173 = scmp.ne.s32.totalorder %s158, %s172
      %p174 = scmp.eq.s32.totalorder %s22, 0
      %p175 = por %p173, %p174
      %s176 = ssub.s32 %s16, %s23
      %p177 = scmp.eq.s32.totalorder %s176, 0
      %s179 = sadd.s32 %s178, 1
      %s180 = scalar_select %p177, %s178, %s179
      %p183 = pneg %p177
      %p184 = scmp.eq.s32.totalorder %s16, 1
      %p185 = por %p183, %p184
      %p186 = scmp.ne.s32.totalorder %s178, %s181
      %p187 = scmp.eq.s32.totalorder %s16, 0
      %p188 = por %p186, %p187
      %p189 = scmp.ne.s32.totalorder %s178, %s181
      %p190 = scmp.eq.s32.totalorder %s21, 1
      %p191 = por %p189, %p190
      %p192 = scmp.ne.s32.totalorder %s181, %s182
      %p193 = scmp.eq.s32.totalorder %s21, 0
      %p194 = por %p192, %p193
      %p195 = scmp.ne.s32.totalorder %s181, %s182
      %p196 = scmp.eq.s32.totalorder %s22, 1
      %p197 = por %p195, %p196
      %p199 = scmp.ne.s32.totalorder %s182, %s198
      %p200 = scmp.eq.s32.totalorder %s22, 0
      %p201 = por %p199, %p200
      %p202 = scmp.le.s32.totalorder 1, %s16
      %p203 = scmp.lt.s32.totalorder %s16, 3
      %p204 = pnand %p202, %p203
      %p205 = pneg %p204
      // Predicated region
      $region9: #{tpu_custom_call.1} parent=5 // pred_check
        _
      $region10: #{tpu_custom_call.1} parent=5 // pred_check_branch
        %207 = sbr.rel (%p204) target = $region12
      $region11: #{tpu_custom_call.1} parent=5 // pred_region
        %s208 = ssub.s32 %s16, 1
        // Predicated region
        $region13: #{tpu_custom_call.1} parent=11 // pred_check
          %p209 = pneg %p63
        $region14: #{tpu_custom_call.1} parent=11 // pred_check_branch
          %211 = sbr.rel (%p209) target = $region16
        $region15: #{tpu_custom_call.1} parent=11 // pred_region
          _
        $region16: #{tpu_custom_call.1} parent=11 // pred_fallthru
          _
        // Predicated region
        $region17: #{tpu_custom_call.1} parent=11 // pred_check
          %p212 = pneg %p84
        $region18: #{tpu_custom_call.1} parent=11 // pred_check_branch
          %214 = sbr.rel (%p212) target = $region20
        $region19: #{tpu_custom_call.1} parent=11 // pred_region
          _
        $region20: #{tpu_custom_call.1} parent=11 // pred_fallthru
          _
        // Predicated region
        $region21: #{tpu_custom_call.1} parent=11 // pred_check
          %p215 = pneg %p105
        $region22: #{tpu_custom_call.1} parent=11 // pred_check_branch
          %217 = sbr.rel (%p215) target = $region24
        $region23: #{tpu_custom_call.1} parent=11 // pred_region
          _
        $region24: #{tpu_custom_call.1} parent=11 // pred_fallthru
          _
        // Predicated region
        $region25: #{tpu_custom_call.1} parent=11 // pred_check
          %p218 = pneg %p126
        $region26: #{tpu_custom_call.1} parent=11 // pred_check_branch
          %220 = sbr.rel (%p218) target = $region28
        $region27: #{tpu_custom_call.1} parent=11 // pred_region
          _
        $region28: #{tpu_custom_call.1} parent=11 // pred_fallthru
          _
        // Predicated region
        $region29: #{tpu_custom_call.1} parent=11 // pred_check
          %p221 = pneg %p147
        $region30: #{tpu_custom_call.1} parent=11 // pred_check_branch
          %223 = sbr.rel (%p221) target = $region32
        $region31: #{tpu_custom_call.1} parent=11 // pred_region
          _
        $region32: #{tpu_custom_call.1} parent=11 // pred_fallthru
          _
        // Predicated region
        $region33: #{tpu_custom_call.1} parent=11 // pred_check
          %p224 = pneg %p168
        $region34: #{tpu_custom_call.1} parent=11 // pred_check_branch
          %226 = sbr.rel (%p224) target = $region36
        $region35: #{tpu_custom_call.1} parent=11 // pred_region
          _
        $region36: #{tpu_custom_call.1} parent=11 // pred_fallthru
          _
      $region12: #{tpu_custom_call.1} parent=5 // pred_fallthru
        _
      %p227 = scmp.lt.s32.totalorder %s16, 2
      // Predicated region
      $region37: #{tpu_custom_call.1} parent=5 // pred_check
        %p228 = pneg %p227
      $region38: #{tpu_custom_call.1} parent=5 // pred_check_branch
        %230 = sbr.rel (%p228) target = $region40
      $region39: #{tpu_custom_call.1} parent=5 // pred_region
        // Predicated region
        $region41: #{tpu_custom_call.1} parent=39 // pred_check
          %p231 = pneg %p36
        $region42: #{tpu_custom_call.1} parent=39 // pred_check_branch
          %233 = sbr.rel (%p231) target = $region44
        $region43: #{tpu_custom_call.1} parent=39 // pred_region
          %p234 = scmp.lt.s32.totalorder %s16, 1
          %s235 = scalar_select %p234, %s16, 1
          %s236 = smul.addr %s235, 10
          %s237 = smul.addr %s236, 8
          %s238 = scalar_lea.vmem %s0, %s237
        $region44: #{tpu_custom_call.1} parent=39 // pred_fallthru
          _
      $region40: #{tpu_custom_call.1} parent=5 // pred_fallthru
        _
      %p239 = scmp.le.s32.totalorder 1, %s16
      %p240 = scmp.lt.s32.totalorder %s16, 3
      %p241 = pnand %p239, %p240
      %p242 = pneg %p241
      // Predicated region
      $region45: #{tpu_custom_call.1} parent=5 // pred_check
        _
      $region46: #{tpu_custom_call.1} parent=5 // pred_check_branch
        %244 = sbr.rel (%p241) target = $region48
      $region47: #{tpu_custom_call.1} parent=5 // pred_region
        %s245 = ssub.s32 %s16, 1
        %p246 = scmp.lt.s32.totalorder %s21, 1
        %s247 = scalar_select %p246, %s21, 1
        %s248 = smul.addr %s247, 10
        %s249 = smul.addr %s248, 8
        %s250 = scalar_lea.vmem %s0, %s249
        %p251 = pneg %p42
        %p252 = pneg %p39
        %p253 = pneg %p63
        %p254 = pneg %p60
        %p255 = pneg %p84
        %p256 = pneg %p81
        %p257 = pneg %p105
        %p258 = pneg %p102
        %p259 = pneg %p126
        %p260 = pneg %p123
        %p261 = pneg %p147
        %p262 = pneg %p144
        %p263 = pneg %p168
        %p264 = pneg %p165
        %p265 = pneg %p194
        %p266 = pneg %p191
        %s267 = sand.u32 %s181, 1
        %s268 = scalar_lea.sflag [#allocation3], %s267
        %s269 = sand.u32 %s181, 1
        %s270 = smul.addr %s269, 16
        %s271 = scalar_lea.vmem [#allocation2], %s270
        %p272 = scmp.lt.s32.totalorder %s21, 1
        %s273 = scalar_select %p272, %s21, 1
        %s274 = smul.addr %s273, 10
        %s275 = smul.addr %s274, 8
        %s276 = scalar_lea.vmem %s0, %s275
        %v277 = vld [vmem:[%s276] sm:$0xff]
        %v278 = vld [vmem:[%s276 + $0x8] sm:$0xff]
        %v279 = vld [vmem:[%s276 + $0x10] sm:$0xff]
        %v280 = vld [vmem:[%s276 + $0x18] sm:$0xff]
        %v281 = vld [vmem:[%s276 + $0x20] sm:$0xff]
        %v282 = vld [vmem:[%s276 + $0x28] sm:$0xff]
        %v283 = vld [vmem:[%s276 + $0x30] sm:$0xff]
        %v284 = vld [vmem:[%s276 + $0x38] sm:$0xff]
        %v285 = vld [vmem:[%s276 + $0x40] sm:$0xff]
        %v286 = vld [vmem:[%s276 + $0x48] sm:$0xff]
        %v287 = vld [vmem:[%s1] sm:$0xff]
        %v288 = vld [vmem:[%s1 + $0x8] sm:$0xff]
        %v289 = vld [vmem:[%s1 + $0x10] sm:$0xff]
        %v290 = vld [vmem:[%s1 + $0x18] sm:$0xff]
        %v291 = vld [vmem:[%s1 + $0x20] sm:$0xff]
        %v292 = vld [vmem:[%s1 + $0x28] sm:$0xff]
        %v293 = vld [vmem:[%s1 + $0x30] sm:$0xff]
        %v294 = vld [vmem:[%s1 + $0x38] sm:$0xff]
        %v295 = vld [vmem:[%s2] sm:$0xff]
        %v296 = vld [vmem:[%s2 + $0x8] sm:$0xff]
        %v297 = vld [vmem:[%s3] sm:$0xff]
        %v298 = vld [vmem:[%s3 + $0x8] sm:$0xff]
        %v299 = vld [vmem:[%s3 + $0x10] sm:$0xff]
        %v300 = vld [vmem:[%s3 + $0x18] sm:$0xff]
        %v301 = vld [vmem:[%s4] sm:$0x1]
        %v302 = vld [vmem:[%s5] sm:$0xff]
        %v303 = vld [vmem:[%s5 + $0x8] sm:$0xff]
        %v304 = vld [vmem:[%s5 + $0x10] sm:$0xff]
        %v305 = vld [vmem:[%s5 + $0x18] sm:$0xff]
        %v306 = vld [vmem:[%s6] sm:$0x1]
        %v308 = vperm.slane %v301, 0
        %vm310 = vcmask 261120
        %v312 = vsel %vm310, %v277, 0
        %v315 = vsel %vm310, %v278, 0
        %v318 = vsel %vm310, %v279, 0
        %v321 = vsel %vm310, %v280, 0
        %v324 = vsel %vm310, %v281, 0
        %v327 = vsel %vm310, %v282, 0
        %v330 = vsel %vm310, %v283, 0
        %v333 = vsel %vm310, %v284, 0
        %v336 = vsel %vm310, %v285, 0
        %v339 = vsel %vm310, %v286, 0
        %341 = vmatpush.msra.mxu0 0.0
        %342 = vmatpush.msra.mxu0 0.0
        %343 = vmatpush.msra.mxu0 0.0
        %344 = vmatpush.msra.mxu0 0.0
        %345 = vmatpush.msra.mxu0 0.0
        %346 = vmatpush.msra.mxu0 0.0
        %347 = vmatpush.msra.mxu0 0.0
        %348 = vmatpush.msra.mxu0 0.0
        %349 = vmatpush.msra.mxu0 0.0
        %350 = vmatpush.msra.mxu0 0.0
        %351 = vmatpush.msra.mxu0 0.0
        %352 = vmatpush.msra.mxu0 0.0
        %353 = vmatpush.msra.mxu0 %v300
        %354 = vmatpush.msra.mxu0 %v299
        %355 = vmatpush.msra.mxu0 %v298
        %356 = vmatpush.msra.mxu0 %v297
        %357 = vmatmul.f32.gmra.mxu0 %v312
        %v358 = vpop.f32.mrf.mxu0
        %v359 = vadd.f32 %v308, %v358
        %360 = vmatmul.f32.gmra.mxu0 %v315
        %v361 = vpop.f32.mrf.mxu0
        %v362 = vadd.f32 %v308, %v361
        %363 = vmatmul.f32.gmra.mxu0 %v318
        %v364 = vpop.f32.mrf.mxu0
        %v365 = vadd.f32 %v308, %v364
        %366 = vmatmul.f32.gmra.mxu0 %v321
        %v367 = vpop.f32.mrf.mxu0
        %v368 = vadd.f32 %v308, %v367
        %369 = vmatmul.f32.gmra.mxu0 %v324
        %v370 = vpop.f32.mrf.mxu0
        %v371 = vadd.f32 %v308, %v370
        %372 = vmatmul.f32.gmra.mxu0 %v327
        %v373 = vpop.f32.mrf.mxu0
        %v374 = vadd.f32 %v308, %v373
        %375 = vmatmul.f32.gmra.mxu0 %v330
        %v376 = vpop.f32.mrf.mxu0
        %v377 = vadd.f32 %v308, %v376
        %378 = vmatmul.f32.gmra.mxu0 %v333
        %v379 = vpop.f32.mrf.mxu0
        %v380 = vadd.f32 %v308, %v379
        %381 = vmatmul.f32.gmra.mxu0 %v336
        %v382 = vpop.f32.mrf.mxu0
        %v383 = vadd.f32 %v308, %v382
        %384 = vmatmul.f32.gmra.mxu0 %v339
        %v385 = vpop.f32.mrf.mxu0
        %v386 = vadd.f32 %v308, %v385
        %387 = vdwg.mxu0
        %v388 = vmax.f32 %v359, 0.0
        %v389 = vmax.f32 %v362, 0.0
        %v390 = vmax.f32 %v365, 0.0
        %v391 = vmax.f32 %v368, 0.0
        %v392 = vmax.f32 %v371, 0.0
        %v393 = vmax.f32 %v374, 0.0
        %v394 = vmax.f32 %v377, 0.0
        %v395 = vmax.f32 %v380, 0.0
        %v396 = vmax.f32 %v383, 0.0
        %v397 = vmax.f32 %v386, 0.0
        %vm398 = vcmask 523264
        %v400 = vsel %vm398, %v287, 0
        %v403 = vsel %vm398, %v288, 0
        %v406 = vsel %vm398, %v289, 0
        %v409 = vsel %vm398, %v290, 0
        %v412 = vsel %vm398, %v291, 0
        %v415 = vsel %vm398, %v292, 0
        %v418 = vsel %vm398, %v293, 0
        %v421 = vsel %vm398, %v294, 0
        %423 = vmatpush.msra.mxu0 0.0
        %424 = vmatpush.msra.mxu0 0.0
        %425 = vmatpush.msra.mxu0 0.0
        %426 = vmatpush.msra.mxu0 0.0
        %427 = vmatpush.msra.mxu0 0.0
        %428 = vmatpush.msra.mxu0 0.0
        %429 = vmatpush.msra.mxu0 0.0
        %430 = vmatpush.msra.mxu0 0.0
        %431 = vmatpush.msra.mxu0 %v284
        %432 = vmatpush.msra.mxu0 %v283
        %433 = vmatpush.msra.mxu0 %v282
        %434 = vmatpush.msra.mxu0 %v281
        %435 = vmatpush.msra.mxu0 %v280
        %436 = vmatpush.msra.mxu0 %v279
        %437 = vmatpush.msra.mxu0 %v278
        %438 = vmatpush.msra.mxu0 %v277
        %439 = vmatmul.f32.gmra.mxu0 %v400
        %v440 = vpop.f32.mrf.mxu0
        %v441 = vadd.f32 0.0, %v440
        %442 = vmatmul.f32.gmra.mxu0 %v403
        %v443 = vpop.f32.mrf.mxu0
        %v444 = vadd.f32 0.0, %v443
        %445 = vmatmul.f32.gmra.mxu0 %v406
        %v446 = vpop.f32.mrf.mxu0
        %v447 = vadd.f32 0.0, %v446
        %448 = vmatmul.f32.gmra.mxu0 %v409
        %v449 = vpop.f32.mrf.mxu0
        %v450 = vadd.f32 0.0, %v449
        %451 = vmatmul.f32.gmra.mxu0 %v412
        %v452 = vpop.f32.mrf.mxu0
        %v453 = vadd.f32 0.0, %v452
        %454 = vmatmul.f32.gmra.mxu0 %v415
        %v455 = vpop.f32.mrf.mxu0
        %v456 = vadd.f32 0.0, %v455
        %457 = vmatmul.f32.gmra.mxu0 %v418
        %v458 = vpop.f32.mrf.mxu0
        %v459 = vadd.f32 0.0, %v458
        %460 = vmatmul.f32.gmra.mxu0 %v421
        %v461 = vpop.f32.mrf.mxu0
        %v462 = vadd.f32 0.0, %v461
        %463 = vdwg.mxu0
        %v464 = vmul.f32 %v441, %v441
        %v465 = vmul.f32 %v444, %v444
        %v466 = vmul.f32 %v447, %v447
        %v467 = vmul.f32 %v450, %v450
        %v468 = vmul.f32 %v453, %v453
        %v469 = vmul.f32 %v456, %v456
        %v470 = vmul.f32 %v459, %v459
        %v471 = vmul.f32 %v462, %v462
        %v472 = vsel %vm310, %v464, 0.0
        %473 = vadd.xlane.f32.xlu0 %v472
        %v474 = vpop.xlane.xlu0 %473
        %v475 = vsel %vm310, %v465, 0.0
        %476 = vadd.xlane.f32.xlu0 %v475
        %v477 = vpop.xlane.xlu0 %476
        %v478 = vsel %vm310, %v466, 0.0
        %479 = vadd.xlane.f32.xlu0 %v478
        %v480 = vpop.xlane.xlu0 %479
        %v481 = vsel %vm310, %v467, 0.0
        %482 = vadd.xlane.f32.xlu0 %v481
        %v483 = vpop.xlane.xlu0 %482
        %v484 = vsel %vm310, %v468, 0.0
        %485 = vadd.xlane.f32.xlu0 %v484
        %v486 = vpop.xlane.xlu0 %485
        %v487 = vsel %vm310, %v469, 0.0
        %488 = vadd.xlane.f32.xlu0 %v487
        %v489 = vpop.xlane.xlu0 %488
        %v490 = vsel %vm310, %v470, 0.0
        %491 = vadd.xlane.f32.xlu0 %v490
        %v492 = vpop.xlane.xlu0 %491
        %v493 = vsel %vm310, %v471, 0.0
        %494 = vadd.xlane.f32.xlu0 %v493
        %v495 = vpop.xlane.xlu0 %494
        %v496 = vmul.f32 %v474, -0.5
        %v497 = vmul.f32 %v477, -0.5
        %v498 = vmul.f32 %v480, -0.5
        %v499 = vmul.f32 %v483, -0.5
        %v500 = vmul.f32 %v486, -0.5
        %v501 = vmul.f32 %v489, -0.5
        %v502 = vmul.f32 %v492, -0.5
        %v503 = vmul.f32 %v495, -0.5
        %v504 = vsel %vm310, %v441, %v496
        %v505 = vsel %vm310, %v444, %v497
        %v506 = vsel %vm310, %v447, %v498
        %v507 = vsel %vm310, %v450, %v499
        %v508 = vsel %vm310, %v453, %v500
        %v509 = vsel %vm310, %v456, %v501
        %v510 = vsel %vm310, %v459, %v502
        %v511 = vsel %vm310, %v462, %v503
        %v512 = vsel %vm310, %v396, 1.0
        %v513 = vsel %vm310, %v397, 1.0
        %vm514 = vcmask 269312
        %v516 = vsel %vm514, %v512, 0
        %v519 = vsel %vm514, %v513, 0
        %v522 = vsel %vm514, %v504, 0
        %v525 = vsel %vm514, %v505, 0
        %v528 = vsel %vm514, %v506, 0
        %v531 = vsel %vm514, %v507, 0
        %v534 = vsel %vm514, %v508, 0
        %v537 = vsel %vm514, %v509, 0
        %v540 = vsel %vm514, %v510, 0
        %v543 = vsel %vm514, %v511, 0
        %545 = vmatpush.xpose.msra.mxu0 0.0
        %546 = vmatpush.xpose.msra.mxu0 0.0
        %547 = vmatpush.xpose.msra.mxu0 0.0
        %548 = vmatpush.xpose.msra.mxu0 0.0
        %549 = vmatpush.xpose.msra.mxu0 0.0
        %550 = vmatpush.xpose.msra.mxu0 0.0
        %551 = vmatpush.xpose.msra.mxu0 0.0
        %552 = vmatpush.xpose.msra.mxu0 0.0
        %553 = vmatpush.xpose.msra.mxu0 %v543
        %554 = vmatpush.xpose.msra.mxu0 %v540
        %555 = vmatpush.xpose.msra.mxu0 %v537
        %556 = vmatpush.xpose.msra.mxu0 %v534
        %557 = vmatpush.xpose.msra.mxu0 %v531
        %558 = vmatpush.xpose.msra.mxu0 %v528
        %559 = vmatpush.xpose.msra.mxu0 %v525
        %560 = vmatpush.xpose.msra.mxu0 %v522
        %561 = vmatmul.f32.gmra.mxu0 %v516
        %v562 = vpop.f32.mrf.mxu0
        %v563 = vadd.f32 0.0, %v562
        %564 = vmatmul.f32.gmra.mxu0 %v519
        %v565 = vpop.f32.mrf.mxu0
        %v566 = vadd.f32 0.0, %v565
        %567 = vdwg.mxu0
        %v568 = vmul.f32 %v563, 2.0
        %v569 = vmul.f32 %v566, 2.0
        %vm570 = vcmp.gt.f32.partialorder %v295, 0.5
        %vm571 = vcmp.gt.f32.partialorder %v296, 0.5
        %v572 = vsel %vm570, %v568, -1e+30
        %v573 = vsel %vm571, %v569, -1e+30
        %v574 = vsel %vm398, %v572, -inf
        %575 = vmax.xlane.f32.xlu0 %v574
        %v576 = vpop.xlane.xlu0 %575
        %v577 = vsel %vm398, %v573, -inf
        %578 = vmax.xlane.f32.xlu0 %v577
        %v579 = vpop.xlane.xlu0 %578
        %v580 = vsub.f32 %v572, %v576
        %v581 = vsub.f32 %v573, %v579
        %v582 = vmul.f32 %v580, 1.442695
        %v583 = vpow.pop %v582
        %v584 = vmul.f32 %v581, 1.442695
        %v585 = vpow.pop %v584
        %v586 = vsel %vm398, %v583, 0.0
        %587 = vadd.xlane.f32.xlu0 %v586
        %v588 = vpop.xlane.xlu0 %587
        %v589 = vsel %vm398, %v585, 0.0
        %590 = vadd.xlane.f32.xlu0 %v589
        %v591 = vpop.xlane.xlu0 %590
        %v592 = vrcp.pop %v588
        %v593 = vmul.f32 %v588, %v592
        %v594 = vsub.f32 1.0, %v593
        %v595 = vmul.f32 %v592, %v594
        %v596 = vadd.f32 %v592, %v595
        %vm597 = vweird.f32 %v588
        %vm598 = vweird.f32 %v592
        %vm599 = vmor %vm597, %vm598
        %v600 = vsel %vm599, %v592, %v596
        %v601 = vand.u32 2147483647, %v588
        %vm602 = vcmp.eq.f32.partialorder %v601, 8.507059e+37
        %v603 = vand.u32 %v588, 2147483648
        %v604 = vor.u32 1.1754944e-38, %v603
        %v605 = vsel %vm602, %v604, %v600
        %v606 = vmul.f32 %v583, %v605
        %v607 = vrcp.pop %v591
        %v608 = vmul.f32 %v591, %v607
        %v609 = vsub.f32 1.0, %v608
        %v610 = vmul.f32 %v607, %v609
        %v611 = vadd.f32 %v607, %v610
        %vm612 = vweird.f32 %v591
        %vm613 = vweird.f32 %v607
        %vm614 = vmor %vm612, %vm613
        %v615 = vsel %vm614, %v607, %v611
        %v616 = vand.u32 2147483647, %v591
        %vm617 = vcmp.eq.f32.partialorder %v616, 8.507059e+37
        %v618 = vand.u32 %v591, 2147483648
        %v619 = vor.u32 1.1754944e-38, %v618
        %v620 = vsel %vm617, %v619, %v615
        %v621 = vmul.f32 %v585, %v620
        %v623 = vperm.slane %v306, 0
        %v626 = vsel %vm310, %v388, 0
        %v629 = vsel %vm310, %v389, 0
        %v632 = vsel %vm310, %v390, 0
        %v635 = vsel %vm310, %v391, 0
        %v638 = vsel %vm310, %v392, 0
        %v641 = vsel %vm310, %v393, 0
        %v644 = vsel %vm310, %v394, 0
        %v647 = vsel %vm310, %v395, 0
        %649 = vmatpush.msra.mxu0 0.0
        %650 = vmatpush.msra.mxu0 0.0
        %651 = vmatpush.msra.mxu0 0.0
        %652 = vmatpush.msra.mxu0 0.0
        %653 = vmatpush.msra.mxu0 0.0
        %654 = vmatpush.msra.mxu0 0.0
        %655 = vmatpush.msra.mxu0 0.0
        %656 = vmatpush.msra.mxu0 0.0
        %657 = vmatpush.msra.mxu0 0.0
        %658 = vmatpush.msra.mxu0 0.0
        %659 = vmatpush.msra.mxu0 0.0
        %660 = vmatpush.msra.mxu0 0.0
        %661 = vmatpush.msra.mxu0 %v305
        %662 = vmatpush.msra.mxu0 %v304
        %663 = vmatpush.msra.mxu0 %v303
        %664 = vmatpush.msra.mxu0 %v302
        %665 = vmatmul.f32.gmra.mxu0 %v626
        %v666 = vpop.f32.mrf.mxu0
        %v667 = vadd.f32 %v623, %v666
        %668 = vmatmul.f32.gmra.mxu0 %v629
        %v669 = vpop.f32.mrf.mxu0
        %v670 = vadd.f32 %v623, %v669
        %671 = vmatmul.f32.gmra.mxu0 %v632
        %v672 = vpop.f32.mrf.mxu0
        %v673 = vadd.f32 %v623, %v672
        %674 = vmatmul.f32.gmra.mxu0 %v635
        %v675 = vpop.f32.mrf.mxu0
        %v676 = vadd.f32 %v623, %v675
        %677 = vmatmul.f32.gmra.mxu0 %v638
        %v678 = vpop.f32.mrf.mxu0
        %v679 = vadd.f32 %v623, %v678
        %680 = vmatmul.f32.gmra.mxu0 %v641
        %v681 = vpop.f32.mrf.mxu0
        %v682 = vadd.f32 %v623, %v681
        %683 = vmatmul.f32.gmra.mxu0 %v644
        %v684 = vpop.f32.mrf.mxu0
        %v685 = vadd.f32 %v623, %v684
        %686 = vmatmul.f32.gmra.mxu0 %v647
        %v687 = vpop.f32.mrf.mxu0
        %v688 = vadd.f32 %v623, %v687
        %689 = vdwg.mxu0
        %v691 = vsel %vm398, %v606, 0
        %v694 = vsel %vm398, %v621, 0
        %696 = vmatpush.msra.mxu0 0.0
        %697 = vmatpush.msra.mxu0 0.0
        %698 = vmatpush.msra.mxu0 0.0
        %699 = vmatpush.msra.mxu0 0.0
        %700 = vmatpush.msra.mxu0 0.0
        %701 = vmatpush.msra.mxu0 0.0
        %702 = vmatpush.msra.mxu0 0.0
        %703 = vmatpush.msra.mxu0 0.0
        %704 = vmatpush.msra.mxu0 %v688
        %705 = vmatpush.msra.mxu0 %v685
        %706 = vmatpush.msra.mxu0 %v682
        %707 = vmatpush.msra.mxu0 %v679
        %708 = vmatpush.msra.mxu0 %v676
        %709 = vmatpush.msra.mxu0 %v673
        %710 = vmatpush.msra.mxu0 %v670
        %711 = vmatpush.msra.mxu0 %v667
        %712 = vmatmul.f32.gmra.mxu0 %v691
        %v713 = vpop.f32.mrf.mxu0
        %v714 = vadd.f32 0.0, %v713
        %715 = vmatmul.f32.gmra.mxu0 %v694
        %v716 = vpop.f32.mrf.mxu0
        %v717 = vadd.f32 0.0, %v716
        %718 = vdwg.mxu0
        %vm719 = vcmask 130048
        %720 = vst.msk [vmem:[%s271] sm:$0xff] %vm719, %v714
        %721 = vst.msk [vmem:[%s271 + $0x8] sm:$0xff] %vm719, %v717
        %s722 = sand.u32 %s181, 1
        %s723 = scalar_lea.sflag [#allocation3], %s722
        %s724 = sand.u32 %s181, 1
        %s725 = smul.addr %s724, 16
        %s726 = scalar_lea.vmem [#allocation2], %s725
        // Predicated region
        $region49: #{tpu_custom_call.1} parent=47 // pred_check
          %p727 = pneg %p191
        $region50: #{tpu_custom_call.1} parent=47 // pred_check_branch
          %729 = sbr.rel (%p727) target = $region52
        $region51: #{tpu_custom_call.1} parent=47 // pred_region
          %731 = vsyncadd %s723, 0
          %s732 = smul.addr %s21, 2
          %s733 = smul.addr %s732, 8
          %s734 = scalar_lea.hbm %s7, %s733
          %s735 = sshll.u32 %s726, 4
          %s736 = int_to_ptr.vmem [resolvable:$true] %s735
          %s737 = sshll.u32 %s734, 4
          %s738 = int_to_ptr.hbm [resolvable:$true] %s737
          %743 = dma.vmem_to_hbm [thread:$0]  %s736, 256, %s738, %s723, 128, 128, 8
        $region52: #{tpu_custom_call.1} parent=47 // pred_fallthru
          _
      $region48: #{tpu_custom_call.1} parent=5 // pred_fallthru
        _
      %p744 = scmp.le.s32.totalorder 2, %s16
      // Predicated region
      $region53: #{tpu_custom_call.1} parent=5 // pred_check
        %p745 = pneg %p744
      $region54: #{tpu_custom_call.1} parent=5 // pred_check_branch
        %747 = sbr.rel (%p745) target = $region56
      $region55: #{tpu_custom_call.1} parent=5 // pred_region
        %s748 = ssub.s32 %s16, 2
        // Predicated region
        $region57: #{tpu_custom_call.1} parent=55 // pred_check
          %p749 = pneg %p197
        $region58: #{tpu_custom_call.1} parent=55 // pred_check_branch
          %751 = sbr.rel (%p749) target = $region60
        $region59: #{tpu_custom_call.1} parent=55 // pred_region
          %s752 = sand.u32 %s182, 1
          %s753 = scalar_lea.sflag [#allocation3], %s752
          %s754 = sand.u32 %s182, 1
          %s755 = smul.addr %s754, 16
          %s756 = scalar_lea.vmem [#allocation2], %s755
          %758 = dma.done %s753, 256
        $region60: #{tpu_custom_call.1} parent=55 // pred_fallthru
          _
      $region56: #{tpu_custom_call.1} parent=5 // pred_fallthru
        _
    $region6: #{tpu_custom_call.1} parent=1 // loop_footer
      %s20 = sadd.s32 1, %s16
    $region7: #{tpu_custom_call.1} parent=1 // loop_footer_branch
      %15 = sbr.rel target = $region3
    $region8: #{tpu_custom_call.1} parent=1 // loop_exit
      _
    %759 = vsyncpa [#allocation3], 1
    %s760 = scalar_lea.sflag [#allocation3], 1
    %761 = vsyncpa %s760, 1

</llo_original>
